<compile_context>
chip_gen: v7x
topology: tpu7x:2x2x1
jax: 0.10.0
libtpu: 0.0.40
codegen_flags: <defaults>
</compile_context>

<pallas_src>
import functools
from math import sqrt

import jax
import jax.numpy as jnp
from jax.experimental import pallas as pl
from jax.experimental.pallas import tpu as pltpu

NUM_CLASSES = 5
LINK_FUNCTION = "logit"      # 'logit' | 'probit' | 'cloglog'
MIN_DISTANCE = 0.0
C_SUB = 8                    # class axis padded to one sublane tile for compute
MAX_LANE_TILE = 65536        # max samples per grid step (multiple of 128)


def _round_up(a, b):
    return (a + b - 1) // b * b


def _pick_tile(m, max_tile):
    """Largest lane tile (multiple of 128, <= max_tile) that still leaves
    >= 4 grid steps when possible, so both v7x TensorCores get work."""
    m128 = _round_up(max(m, 1), 128)
    tm = max(128, _round_up(pl.cdiv(m128, 4), 128))
    return min(tm, max_tile, m128)


def _clm_kernel(th_ref, x_ref, o_ref, *, num_classes, link_function):
    # th_ref: VMEM (C_SUB, 1)        converted thresholds (rows >= C-1 unused)
    # x_ref : VMEM (1, tm)           projected value per sample (samples on lanes)
    # o_ref : VMEM (num_classes, tm) class probabilities
    x = x_ref[...]                                               # (1, tm)
    th = th_ref[...]                                             # (C_SUB, 1)
    tm = x.shape[1]
    row = jax.lax.broadcasted_iota(jnp.int32, (C_SUB, tm), 0)    # class index

    # z[j, s] = th[j] - x[s], clipped exactly like the torch module.
    z = jnp.clip(th - x, -10.0, 10.0)                            # (C_SUB, tm)

    if link_function == "probit":
        link = 0.5 * (1.0 + jax.lax.erf(z * (1.0 / sqrt(2.0))))
    elif link_function == "cloglog":
        link = 1.0 - jnp.exp(-jnp.exp(z))
    else:  # logit: single EUP op per element, exact sigmoid (sums to 1)
        link = 0.5 * (1.0 + jnp.tanh(0.5 * z))

    # Cumulative probabilities: cum[j] = link(th[j] - x) for j < C-1, else 1.
    cum = jnp.where(row >= num_classes - 1, 1.0, link)

    # out[0] = cum[0]; out[j] = cum[j] - cum[j-1].  Sublane rotate on the XLU;
    # the wrap-around into row 0 is masked by the row == 0 select.
    prev = pltpu.roll(cum, shift=1, axis=0)
    probs = jnp.where(row == 0, cum, cum - prev)                 # (C_SUB, tm)

    # Only the num_classes valid rows are stored (rows 5..7 are padding).
    o_ref[...] = probs[:num_classes, :].astype(o_ref.dtype)


def _convert_thresholds(thresholds_b, thresholds_a, min_distance):
    # Same semantics as CLM._convert_thresholds: cumsum of (b, a**2 + d).
    a = thresholds_a ** 2 + min_distance
    params = jnp.concatenate([thresholds_b, a], axis=0)          # (num_classes-1,)
    return jnp.cumsum(params)


def clm_forward(x, thresholds_b, thresholds_a,
                num_classes=NUM_CLASSES,
                link_function=LINK_FUNCTION,
                min_distance=MIN_DISTANCE,
                max_lane_tile=MAX_LANE_TILE,
                out_dtype=jnp.float32,       # bf16 halves the dominant write traffic
                class_major=False):
    """x: any shape; flattened to (m,) exactly like the torch module.

    Returns (m, num_classes) by default (torch-compatible), or the kernel-native
    (num_classes, m) layout when class_major=True (no extra HBM pass)."""
    x2d = jnp.reshape(x, (1, -1)).astype(jnp.float32)            # (1, m), metadata only
    m = x2d.shape[1]

    tm = _pick_tile(m, max_lane_tile)
    grid = (pl.cdiv(m, tm),)

    th = _convert_thresholds(thresholds_b.astype(jnp.float32),
                             thresholds_a.astype(jnp.float32),
                             min_distance)                        # (num_classes-1,)
    th_col = jnp.zeros((C_SUB, 1), jnp.float32).at[:num_classes - 1, 0].set(th)

    # v5e's default scoped-VMEM limit is only 16 MiB; for large tiles the
    # elementwise temporaries plus double-buffered I/O can exceed it, so raise
    # it.  48 MiB is safe on all generations (physical VMEM: 128 MiB on
    # v5e/v6e, 64 MiB per TensorCore on v7x).
    vmem_limit = 48 * 1024 * 1024 if tm > 8192 else None

    kernel = functools.partial(_clm_kernel,
                               num_classes=num_classes,
                               link_function=link_function)

    out_cm = pl.pallas_call(
        kernel,
        out_shape=jax.ShapeDtypeStruct((num_classes, m), out_dtype),
        grid=grid,
        in_specs=[
            # Constant-index block: DMA'd once, reused every grid step.
            pl.BlockSpec((C_SUB, 1), lambda i: (0, 0)),
            pl.BlockSpec((1, tm), lambda i: (0, i)),
        ],
        out_specs=pl.BlockSpec((num_classes, tm), lambda i: (0, i)),
        compiler_params=pltpu.CompilerParams(
            dimension_semantics=("parallel",),
            vmem_limit_bytes=vmem_limit),
    )(th_col, x2d)

    if class_major:
        return out_cm                      # (num_classes, m), no extra HBM pass
    # Torch-compatible layout.  For large m prefer class_major=True or fuse
    # this transpose into the consumer; as a standalone op it is a second
    # HBM pass over the output.
    return out_cm.T


def _reference(x, thresholds_b, thresholds_a,
               num_classes=NUM_CLASSES,
               link_function=LINK_FUNCTION,
               min_distance=MIN_DISTANCE):
    # Pure-JAX reference mirroring the torch module exactly.
    th = _convert_thresholds(thresholds_b.astype(jnp.float32),
                             thresholds_a.astype(jnp.float32), min_distance)
    proj = jnp.reshape(x, (-1,)).astype(jnp.float32)
    z = jnp.clip(th[None, :] - proj[:, None], -10.0, 10.0)
    if link_function == "probit":
        a3T = jax.scipy.stats.norm.cdf(z)
    elif link_function == "cloglog":
        a3T = 1.0 - jnp.exp(-jnp.exp(z))
    else:
        a3T = 1.0 / (1.0 + jnp.exp(-z))
    cum = jnp.concatenate([a3T, jnp.ones((proj.shape[0], 1), jnp.float32)], axis=1)
    return jnp.concatenate([cum[:, :1], cum[:, 1:] - cum[:, :-1]], axis=1)


if __name__ == "__main__":
    key = jax.random.PRNGKey(0)
    k_in, k_w, k_b, k_big = jax.random.split(key, 4)

    # Mimic the docstring usage: inp (10, 5) -> Linear(5, 1) -> CLM(5, 'logit').
    m, d = 10, 5
    inp = jax.random.normal(k_in, (m, d), jnp.float32)
    w = jax.random.normal(k_w, (d, 1), jnp.float32) / jnp.sqrt(d)
    b = jax.random.normal(k_b, (1,), jnp.float32) * 0.1
    projected = inp @ w + b                       # (10, 1) -- glue in plain JAX

    # Deterministic parameter init (matches CLM.__init__).
    thresholds_b = jnp.array([0.0], jnp.float32)
    thresholds_a = jnp.ones((NUM_CLASSES - 2,), jnp.float32)

    out = clm_forward(projected, thresholds_b, thresholds_a)
    out = jax.block_until_ready(out)
    ref = _reference(projected, thresholds_b, thresholds_a)
    assert out.shape == (m, NUM_CLASSES), out.shape
    assert jnp.allclose(out, ref, atol=1e-5, rtol=1e-5), (out, ref)
    assert jnp.allclose(out.sum(axis=1), 1.0, atol=1e-5)

    # Second check: multi-step grid, partial last block, class-major output.
    m2 = 1000
    proj2 = jax.random.normal(k_big, (m2, 1), jnp.float32)
    out2 = jax.block_until_ready(
        clm_forward(proj2, thresholds_b, thresholds_a, class_major=True))
    ref2 = _reference(proj2, thresholds_b, thresholds_a)
    assert out2.shape == (NUM_CLASSES, m2), out2.shape
    assert jnp.allclose(out2.T, ref2, atol=1e-5, rtol=1e-5)

    print("KERNEL_OK")
</pallas_src>

<mosaic_0001>
module attributes {stable_mosaic.version = 11 : i64} {
  func.func @_clm_kernel(%arg0: i32, %arg1: memref<8x1xf32, #tpu.memory_space<vmem>>, %arg2: memref<1x128xf32, #tpu.memory_space<vmem>>, %arg3: memref<5x128xf32, #tpu.memory_space<vmem>>) attributes {dimension_semantics = [#tpu.dimension_semantics<parallel>], iteration_bounds = array<i64: 1>, scalar_prefetch = 0 : i64, scratch_operands = 0 : i64, tpu.core_type = #tpu.core_type<tc>, window_params = [{pipeline_mode = #tpu.pipeline_mode<synchronous>, transform_indices = @transform_0, window_bounds = array<i64: 8, 1>}, {transform_indices = @transform_1, window_bounds = array<i64: 1, 128>}, {transform_indices = @transform_2, window_bounds = array<i64: 5, 128>}]} {
    %c0 = arith.constant 0 : index
    %c0_0 = arith.constant 0 : index
    %0 = vector.load %arg2[%c0, %c0_0] : memref<1x128xf32, #tpu.memory_space<vmem>>, vector<1x128xf32>
    %c0_1 = arith.constant 0 : index
    %c0_2 = arith.constant 0 : index
    %1 = vector.load %arg1[%c0_1, %c0_2] : memref<8x1xf32, #tpu.memory_space<vmem>>, vector<8x1xf32>
    %2 = tpu.iota {dimensions = array<i32: 0>} : vector<8x128xi32>
    %3 = vector.broadcast %1 : vector<8x1xf32> to vector<8x128xf32>
    %4 = vector.broadcast %0 : vector<1x128xf32> to vector<8x128xf32>
    %5 = arith.subf %3, %4 : vector<8x128xf32>
    %cst = arith.constant -1.000000e+01 : f32
    %cst_3 = arith.constant 1.000000e+01 : f32
    %6 = vector.broadcast %cst : f32 to vector<8x128xf32>
    %7 = arith.maximumf %6, %5 : vector<8x128xf32>
    %8 = vector.broadcast %cst_3 : f32 to vector<8x128xf32>
    %9 = arith.minimumf %8, %7 : vector<8x128xf32>
    %cst_4 = arith.constant 5.000000e-01 : f32
    %10 = vector.broadcast %cst_4 : f32 to vector<8x128xf32>
    %11 = arith.mulf %10, %9 : vector<8x128xf32>
    %12 = math.tanh %11 : vector<8x128xf32>
    %cst_5 = arith.constant 1.000000e+00 : f32
    %13 = vector.broadcast %cst_5 : f32 to vector<8x128xf32>
    %14 = arith.addf %13, %12 : vector<8x128xf32>
    %cst_6 = arith.constant 5.000000e-01 : f32
    %15 = vector.broadcast %cst_6 : f32 to vector<8x128xf32>
    %16 = arith.mulf %15, %14 : vector<8x128xf32>
    %c4_i32 = arith.constant 4 : i32
    %17 = vector.broadcast %c4_i32 : i32 to vector<8x128xi32>
    %18 = arith.cmpi sge, %2, %17 : vector<8x128xi32>
    %cst_7 = arith.constant 1.000000e+00 : f32
    %19 = vector.broadcast %cst_7 : f32 to vector<8x128xf32>
    %20 = arith.select %18, %19, %16 : vector<8x128xi1>, vector<8x128xf32>
    %c1_i32 = arith.constant 1 : i32
    %21 = tpu.dynamic_rotate %20 by %c1_i32 dim 0 : vector<8x128xf32>, i32 -> vector<8x128xf32>
    %c0_i32 = arith.constant 0 : i32
    %22 = vector.broadcast %c0_i32 : i32 to vector<8x128xi32>
    %23 = arith.cmpi eq, %2, %22 : vector<8x128xi32>
    %24 = arith.subf %20, %21 : vector<8x128xf32>
    %25 = arith.select %23, %20, %24 : vector<8x128xi1>, vector<8x128xf32>
    %26 = vector.extract_strided_slice %25 {offsets = [0, 0], sizes = [5, 128], strides = [1, 1]} : vector<8x128xf32> to vector<5x128xf32>
    %c0_8 = arith.constant 0 : index
    %c0_9 = arith.constant 0 : index
    %27 = vector.load %arg3[%c0_8, %c0_9] : memref<5x128xf32, #tpu.memory_space<vmem>>, vector<5x128xf32>
    tpu.vector_store %arg3[%c0_8, %c0_9], %26 {strides = array<i32>} : memref<5x128xf32, #tpu.memory_space<vmem>>, vector<5x128xf32>,
    return
  }
  func.func @transform_0(%arg0: i32) -> (i32, i32) {
    %c0_i32 = arith.constant 0 : i32
    %c0_i32_0 = arith.constant 0 : i32
    %c0_i32_1 = arith.constant 0 : i32
    return %c0_i32, %c0_i32_0 : i32, i32
  }
  func.func @transform_1(%arg0: i32) -> (i32, i32) {
    %c0_i32 = arith.constant 0 : i32
    %c0_i32_0 = arith.constant 0 : i32
    return %c0_i32, %arg0 : i32, i32
  }
  func.func @transform_2(%arg0: i32) -> (i32, i32) {
    %c0_i32 = arith.constant 0 : i32
    %c0_i32_0 = arith.constant 0 : i32
    return %c0_i32, %arg0 : i32, i32
  }
}

</mosaic_0001>

<llo_original>
// kernel: tpu_custom_call.1
$region0: #{tpu_custom_call.1}
  #allocation0 [shape = 'u32[]', space=smem, size = 0x4, offset = 0x4, fixed_abs, tag = 'smem constant byte address 0x4 - core index']
  #allocation1 [shape = 'u32[144,128]{1,0:T(1,128)}', space=vmem, size = 0x12000, scoped, tag = 'internal scratch']
  %s0 = inlined_call_operand.vmem [shape: f32[8,1], index: 0, kind: input, shape index: {}]
  %s1 = inlined_call_operand.vmem [shape: f32[1,10], index: 1, kind: input, shape index: {}]
  %s2 = inlined_call_operand.hbm [shape: f32[5,10], index: 2, kind: output, shape index: {}]
  %s3 = sld [smem:[#allocation0]]
  $region18: #{tpu_custom_call.1} parent=0
    _
  %s5 = ssub.s32 1, %s3
  %s6 = scalar_select 0, %s5, %s3
  $region1: #{tpu_custom_call.1} parent=0
    #allocation2 [shape = 'u8[4096]{0}', space=vmem, size = 0x1000, scoped, tag = 'output window, operand 0, single buffered']
    #allocation3 [shape = 's32[1]{0}', space=sflag, size = 0x4, scoped, tag = 'scoped memory for tpu_custom_call.1']
    %7 = vsyncpa [#allocation3], 0
    // Predicated region
    $region2: #{tpu_custom_call.1} parent=1 // pred_check
      _
    $region3: #{tpu_custom_call.1} parent=1 // pred_check_branch
      %9 = sbr.rel (0) target = $region5
    $region4: #{tpu_custom_call.1} parent=1 // pred_region
      _
    $region5: #{tpu_custom_call.1} parent=1 // pred_fallthru
      _
    // Predicated region
    $region6: #{tpu_custom_call.1} parent=1 // pred_check
      _
    $region7: #{tpu_custom_call.1} parent=1 // pred_check_branch
      %11 = sbr.rel (0) target = $region9
    $region8: #{tpu_custom_call.1} parent=1 // pred_region
      _
    $region9: #{tpu_custom_call.1} parent=1 // pred_fallthru
      _
    %v12 = vld [vmem:[%s1] sm:$0x1]
    %v13 = vld [vmem:[%s0] sm:$0xff]
    %v14 = vlaneseq
    %v15 = vshrl.u32 %v14, 7
    %17 = vset.pattern.permute.xlu0 0
    %18 = vperm.xlu0 %17, %v13
    %v19 = vpop.permute.xlu0 %18
    %v22 = vlaneseq
    %v23 = vshrl.u32 %v22, 7
    %v24 = vsub.s32 0, %v23
    %v25 = vrot.slane %v12, %v24
    %v27 = vsub.f32 %v19, %v25
    %v28 = vmax.f32 %v27, -10.0
    %v29 = vmin.f32 %v28, 10.0
    %v30 = vmul.f32 %v29, 0.5
    %v31 = vtanh.pop %v30
    %v32 = vadd.f32 %v31, 1.0
    %v33 = vmul.f32 %v32, 0.5
    %vm34 = vcmp.ge.s32.totalorder %v15, 4
    %v35 = vsel %vm34, 1.0, %v33
    %v36 = vrot.slane %v35, 7
    %vm37 = vcmp.eq.s32.totalorder %v15, 0
    %v38 = vsub.f32 %v35, %v36
    %v39 = vsel %vm37, %v35, %v38
    %40 = vst [vmem:[#allocation2] sm:$0x1f] %v39
    // Predicated region
    $region10: #{tpu_custom_call.1} parent=1 // pred_check
      _
    $region11: #{tpu_custom_call.1} parent=1 // pred_check_branch
      %42 = sbr.rel (0) target = $region13
    $region12: #{tpu_custom_call.1} parent=1 // pred_region
      %s44 = ssub.s32 128, 128
      %45 = vsyncadd [#allocation3], %s44
      %s47 = sshll.u32 [#allocation2], 4
      %s48 = int_to_ptr.vmem [resolvable:$true] %s47
      %50 = dma.vmem_to_hbm [thread:$0]  %s48, 128, %s2, [#allocation3]
    $region13: #{tpu_custom_call.1} parent=1 // pred_fallthru
      _
    // Predicated region
    $region14: #{tpu_custom_call.1} parent=1 // pred_check
      _
    $region15: #{tpu_custom_call.1} parent=1 // pred_check_branch
      %52 = sbr.rel (0) target = $region17
    $region16: #{tpu_custom_call.1} parent=1 // pred_region
      %53 = dma.done [#allocation3], 128
    $region17: #{tpu_custom_call.1} parent=1 // pred_fallthru
      _
    %54 = vsyncpa [#allocation3], 1

</llo_original>
